<compile_context>
chip_gen: v7x
topology: tpu7x:2x2x1
jax: 0.10.0
libtpu: 0.0.40
codegen_flags: <defaults>
</compile_context>

<pallas_src>
import functools
import math

import jax
import jax.numpy as jnp
from jax.experimental import pallas as pl
from jax.experimental.pallas import tpu as pltpu


# ---------------- math helpers (static temperature, usable in- and out-of-kernel) --

def _log_t(u, t):
    if t == 1.0:
        return jnp.log(u)
    return (jnp.power(u, 1.0 - t) - 1.0) / (1.0 - t)


def _exp_t(u, t):
    if t == 1.0:
        return jnp.exp(u)
    return jnp.power(jnp.maximum(1.0 + (1.0 - t) * u, 0.0), 1.0 / (1.0 - t))


def _tempered_softmax(acts, t2, num_iters):
    """acts: (..., C) f32. `t2` / `num_iters` are static Python values."""
    if t2 == 1.0:
        m = jnp.max(acts, axis=-1, keepdims=True)
        e = jnp.exp(acts - m)
        return e / jnp.sum(e, axis=-1, keepdims=True)

    mu = jnp.max(acts, axis=-1, keepdims=True)
    a0 = acts - mu
    if t2 > 1.0:
        # fixed-point normalization (tail heaviness) — matches the reference loop
        a = a0
        for _ in range(num_iters):
            z = jnp.sum(_exp_t(a, t2), axis=-1, keepdims=True)
            a = a0 * jnp.power(z, 1.0 - t2)
        z = jnp.sum(_exp_t(a, t2), axis=-1, keepdims=True)
        norm = -_log_t(1.0 / z, t2) + mu
    else:
        # binary-search normalization (finite support, t2 < 1)
        eff_dim = jnp.sum(
            (a0 > -1.0 / (1.0 - t2)).astype(acts.dtype), axis=-1, keepdims=True)
        lower = jnp.zeros_like(mu)
        upper = -_log_t(1.0 / eff_dim, t2) * jnp.ones_like(lower)
        for _ in range(num_iters):
            logt_part = (upper + lower) / 2.0
            sp = jnp.sum(_exp_t(a0 - logt_part, t2), axis=-1, keepdims=True)
            upd = (sp < 1.0).astype(acts.dtype)
            lower = lower * upd + (1.0 - upd) * logt_part
            upper = upper * (1.0 - upd) + upd * logt_part
        norm = (upper + lower) / 2.0 + mu
    return _exp_t(acts - norm, t2)


def _label_term_py(x, t1):
    """Host-side fold of  x*log_t(x+1e-10, t1) - x^(2-t1)/(2-t1)  for scalar x."""
    if t1 == 1.0:
        lt = math.log(x + 1e-10)
    else:
        lt = ((x + 1e-10) ** (1.0 - t1) - 1.0) / (1.0 - t1)
    return x * lt - (x ** (2.0 - t1)) / (2.0 - t1)


# ---------------- Pallas kernel ----------------------------------------------------

def _bitempered_kernel(labels_ref, act_ref, out_ref, *, t1, t2, num_iters,
                       int_labels, smooth_coef, smooth_off, label_const):
    acts = act_ref[...]                                    # (TB, C) f32
    tb, num_classes = acts.shape

    probs = _tempered_softmax(acts, t2, num_iters)

    # probability-side terms: reuse probs^(1-t1) for both log_t(probs, t1) and
    # probs^(2-t1)  -> 2 full-tile powers instead of 3.
    if t1 == 1.0:
        logt_probs = jnp.log(probs)
        probs_pow = probs                                  # probs^(2-1) = probs
    else:
        p1 = jnp.power(probs, 1.0 - t1)                    # probs^(1-t1)
        logt_probs = (p1 - 1.0) / (1.0 - t1)               # log_t(probs, t1)
        probs_pow = p1 * probs                             # probs^(2-t1)

    if int_labels:
        lab_idx = labels_ref[...]                          # (TB, 1) int32
        iota = jax.lax.broadcasted_iota(jnp.int32, (tb, num_classes), 1)
        onehot = (iota == lab_idx).astype(jnp.float32)
        lab = onehot * smooth_coef + smooth_off            # smoothed one-hot
        # label-only loss terms are a per-row constant (folded on the host)
        lab_terms = jnp.float32(label_const)
    else:
        lab = labels_ref[...].astype(jnp.float32) * smooth_coef + smooth_off
        lab_terms = jnp.sum(lab * _log_t(lab + 1e-10, t1)
                            - jnp.power(lab, 2.0 - t1) / (2.0 - t1),
                            axis=-1, keepdims=True)

    # TODO(synk): when C < 128 only C of the 128 lanes carry data; packing
    # 128//C rows per vreg (segmented class reductions) would raise EUP/VPU
    # utilization further — not done here to keep the reductions simple.
    loss_rows = (jnp.sum(probs_pow / (2.0 - t1) - lab * logt_probs,
                         axis=-1, keepdims=True) + lab_terms)   # (TB, 1)
    out_ref[...] = loss_rows


# ---------------- wrapper -----------------------------------------------------------

def _default_block_rows(batch, num_classes):
    # ~1 MiB activation tile: double-buffered inputs + the handful of full-tile
    # f32 temporaries stay well inside default scoped VMEM on v5e/v6e/v7x
    # (v7x has only 64 MiB physical), while amortizing the per-grid-step cost.
    rows = (1 << 20) // (4 * max(int(num_classes), 1))
    rows = max(8, min(rows, 1024))
    rows = min(rows, -(-int(batch) // 8) * 8)   # no bigger than 8-aligned batch
    return max(8, (rows // 8) * 8)


def bi_tempered_loss(pred, label, t1, t2, smoothing=0.0, p=0.5, num_iters=5,
                     reduction="mean", block_rows=None):
    """Pallas implementation of BiTemperedLoss.forward (default reduction='mean')."""
    pred = jnp.asarray(pred, jnp.float32)
    B, C = pred.shape
    t1, t2, smoothing = float(t1), float(t2), float(smoothing)

    int_labels = jnp.ndim(label) < pred.ndim

    # TODO(synk): the PyTorch reference gates label smoothing on host RNG
    # (`random.random() > p`); applied deterministically here for reproducibility.
    if smoothing > 0.0:
        smooth_coef = 1.0 - smoothing * C / (C - 1)
        smooth_off = smoothing / (C - 1)
    else:
        smooth_coef, smooth_off = 1.0, 0.0

    # label-only loss terms folded to a per-row constant (integer-label path).
    on_val = smooth_coef + smooth_off
    off_val = smooth_off
    label_const = (_label_term_py(on_val, t1)
                   + (C - 1) * _label_term_py(off_val, t1))

    if block_rows is None:
        block_rows = _default_block_rows(B, C)
    block_rows = max(8, (int(block_rows) // 8) * 8)

    n_blocks = pl.cdiv(B, block_rows)
    B_pad = n_blocks * block_rows

    if int_labels:
        lab_arr = jnp.asarray(label, jnp.int32).reshape(B, 1)
        lab_spec = pl.BlockSpec((block_rows, 1), lambda i: (i, 0))
    else:
        lab_arr = jnp.asarray(label, jnp.float32)
        lab_spec = pl.BlockSpec((block_rows, C), lambda i: (i, 0))

    if B_pad != B:
        # pad with zero rows so the ragged tail never contributes garbage;
        # the padded per-row losses are sliced off below.
        pred_in = jnp.pad(pred, ((0, B_pad - B), (0, 0)))
        lab_arr = jnp.pad(lab_arr, ((0, B_pad - B), (0, 0)))
    else:
        pred_in = pred

    kernel = functools.partial(
        _bitempered_kernel, t1=t1, t2=t2, num_iters=int(num_iters),
        int_labels=bool(int_labels), smooth_coef=smooth_coef,
        smooth_off=smooth_off, label_const=float(label_const))

    n_powers = (int(num_iters) + 3) if t2 != 1.0 else 3
    cost = pl.CostEstimate(
        flops=int(20 * B_pad * C),
        transcendentals=int(2 * n_powers * B_pad * C),
        bytes_accessed=int(pred_in.size * 4
                           + lab_arr.size * lab_arr.dtype.itemsize
                           + B_pad * 4))

    loss_rows = pl.pallas_call(
        kernel,
        out_shape=jax.ShapeDtypeStruct((B_pad, 1), jnp.float32),
        grid=(n_blocks,),
        in_specs=[lab_spec,
                  pl.BlockSpec((block_rows, C), lambda i: (i, 0))],
        out_specs=pl.BlockSpec((block_rows, 1), lambda i: (i, 0)),
        compiler_params=pltpu.CompilerParams(
            dimension_semantics=("parallel",)),   # rows independent -> both TCs on v7x
        cost_estimate=cost,
    )(lab_arr, pred_in)

    loss_rows = loss_rows[:B, 0]
    if reduction == "none":
        return loss_rows
    if reduction == "sum":
        return jnp.sum(loss_rows)
    return jnp.mean(loss_rows)           # 'mean' (module default)


# ---------------- pure-JAX reference (follows the PyTorch math elementwise) ---------

def _reference_loss(pred, labels_onehot, t1, t2, num_iters=5):
    probs = _tempered_softmax(pred.astype(jnp.float32), t2, num_iters)
    lab = labels_onehot.astype(jnp.float32)
    loss = (lab * _log_t(lab + 1e-10, t1)
            - lab * _log_t(probs, t1)
            - jnp.power(lab, 2.0 - t1) / (2.0 - t1)
            + jnp.power(probs, 2.0 - t1) / (2.0 - t1))
    return jnp.mean(jnp.sum(loss, axis=-1))


if __name__ == "__main__":
    # module "parameters" (constructor args), chosen deterministically
    t1, t2, smoothing, p = 0.8, 1.4, 0.1, 0.5

    B, C = 16, 32
    key = jax.random.PRNGKey(0)
    k1, k2 = jax.random.split(key)
    pred = jax.random.normal(k1, (B, C), dtype=jnp.float32) * 3.0
    label = jax.random.randint(k2, (B,), 0, C)

    out = bi_tempered_loss(pred, label, t1, t2, smoothing, p)
    out = jax.block_until_ready(out)

    # reference check with identical (deterministic) label smoothing
    onehot = jax.nn.one_hot(label, C, dtype=jnp.float32)
    onehot = (1.0 - smoothing * C / (C - 1)) * onehot + smoothing / (C - 1)
    ref = _reference_loss(pred, onehot, t1, t2, num_iters=5)

    assert jnp.isfinite(out), out
    assert jnp.allclose(out, ref, rtol=1e-4, atol=1e-5), (out, ref)
    print("KERNEL_OK")
</pallas_src>

<mosaic_0001>
module attributes {stable_mosaic.version = 11 : i64} {
  func.func @_bitempered_kernel(%arg0: i32, %arg1: memref<16x1xi32, #tpu.memory_space<vmem>>, %arg2: memref<16x32xf32, #tpu.memory_space<vmem>>, %arg3: memref<16x1xf32, #tpu.memory_space<vmem>>) attributes {dimension_semantics = [#tpu.dimension_semantics<parallel>], iteration_bounds = array<i64: 1>, scalar_prefetch = 0 : i64, scratch_operands = 0 : i64, tpu.core_type = #tpu.core_type<tc>, window_params = [{transform_indices = @transform_0, window_bounds = array<i64: 16, 1>}, {transform_indices = @transform_1, window_bounds = array<i64: 16, 32>}, {transform_indices = @transform_2, window_bounds = array<i64: 16, 1>}]} {
    %c0 = arith.constant 0 : index
    %c0_0 = arith.constant 0 : index
    %0 = vector.load %arg2[%c0, %c0_0] : memref<16x32xf32, #tpu.memory_space<vmem>>, vector<16x32xf32>
    %cst = arith.constant dense<0xFF800000> : vector<16xf32>
    %1 = vector.multi_reduction <maximumf>, %0, %cst [1] : vector<16x32xf32> to vector<16xf32>
    %2 = vector.shape_cast %1 : vector<16xf32> to vector<16x1xf32>
    %3 = vector.broadcast %2 : vector<16x1xf32> to vector<16x32xf32>
    %4 = arith.subf %0, %3 : vector<16x32xf32>
    %cst_1 = arith.constant -4.000000e-01 : f32
    %5 = vector.broadcast %cst_1 : f32 to vector<16x32xf32>
    %6 = arith.mulf %5, %4 : vector<16x32xf32>
    %cst_2 = arith.constant 1.000000e+00 : f32
    %7 = vector.broadcast %cst_2 : f32 to vector<16x32xf32>
    %8 = arith.addf %7, %6 : vector<16x32xf32>
    %cst_3 = arith.constant 0.000000e+00 : f32
    %9 = vector.broadcast %cst_3 : f32 to vector<16x32xf32>
    %10 = arith.maximumf %8, %9 : vector<16x32xf32>
    %cst_4 = arith.constant -2.500000e+00 : f32
    %11 = vector.broadcast %cst_4 : f32 to vector<16x32xf32>
    %12 = math.powf %10, %11 : vector<16x32xf32>
    %cst_5 = arith.constant dense<0.000000e+00> : vector<16xf32>
    %13 = vector.multi_reduction <add>, %12, %cst_5 [1] : vector<16x32xf32> to vector<16xf32>
    %14 = vector.shape_cast %13 : vector<16xf32> to vector<16x1xf32>
    %cst_6 = arith.constant -4.000000e-01 : f32
    %15 = vector.broadcast %cst_6 : f32 to vector<16x1xf32>
    %16 = math.powf %14, %15 : vector<16x1xf32>
    %17 = vector.broadcast %16 : vector<16x1xf32> to vector<16x32xf32>
    %18 = arith.mulf %4, %17 : vector<16x32xf32>
    %cst_7 = arith.constant -4.000000e-01 : f32
    %19 = vector.broadcast %cst_7 : f32 to vector<16x32xf32>
    %20 = arith.mulf %19, %18 : vector<16x32xf32>
    %cst_8 = arith.constant 1.000000e+00 : f32
    %21 = vector.broadcast %cst_8 : f32 to vector<16x32xf32>
    %22 = arith.addf %21, %20 : vector<16x32xf32>
    %cst_9 = arith.constant 0.000000e+00 : f32
    %23 = vector.broadcast %cst_9 : f32 to vector<16x32xf32>
    %24 = arith.maximumf %22, %23 : vector<16x32xf32>
    %cst_10 = arith.constant -2.500000e+00 : f32
    %25 = vector.broadcast %cst_10 : f32 to vector<16x32xf32>
    %26 = math.powf %24, %25 : vector<16x32xf32>
    %cst_11 = arith.constant dense<0.000000e+00> : vector<16xf32>
    %27 = vector.multi_reduction <add>, %26, %cst_11 [1] : vector<16x32xf32> to vector<16xf32>
    %28 = vector.shape_cast %27 : vector<16xf32> to vector<16x1xf32>
    %cst_12 = arith.constant -4.000000e-01 : f32
    %29 = vector.broadcast %cst_12 : f32 to vector<16x1xf32>
    %30 = math.powf %28, %29 : vector<16x1xf32>
    %31 = vector.broadcast %30 : vector<16x1xf32> to vector<16x32xf32>
    %32 = arith.mulf %4, %31 : vector<16x32xf32>
    %cst_13 = arith.constant -4.000000e-01 : f32
    %33 = vector.broadcast %cst_13 : f32 to vector<16x32xf32>
    %34 = arith.mulf %33, %32 : vector<16x32xf32>
    %cst_14 = arith.constant 1.000000e+00 : f32
    %35 = vector.broadcast %cst_14 : f32 to vector<16x32xf32>
    %36 = arith.addf %35, %34 : vector<16x32xf32>
    %cst_15 = arith.constant 0.000000e+00 : f32
    %37 = vector.broadcast %cst_15 : f32 to vector<16x32xf32>
    %38 = arith.maximumf %36, %37 : vector<16x32xf32>
    %cst_16 = arith.constant -2.500000e+00 : f32
    %39 = vector.broadcast %cst_16 : f32 to vector<16x32xf32>
    %40 = math.powf %38, %39 : vector<16x32xf32>
    %cst_17 = arith.constant dense<0.000000e+00> : vector<16xf32>
    %41 = vector.multi_reduction <add>, %40, %cst_17 [1] : vector<16x32xf32> to vector<16xf32>
    %42 = vector.shape_cast %41 : vector<16xf32> to vector<16x1xf32>
    %cst_18 = arith.constant -4.000000e-01 : f32
    %43 = vector.broadcast %cst_18 : f32 to vector<16x1xf32>
    %44 = math.powf %42, %43 : vector<16x1xf32>
    %45 = vector.broadcast %44 : vector<16x1xf32> to vector<16x32xf32>
    %46 = arith.mulf %4, %45 : vector<16x32xf32>
    %cst_19 = arith.constant -4.000000e-01 : f32
    %47 = vector.broadcast %cst_19 : f32 to vector<16x32xf32>
    %48 = arith.mulf %47, %46 : vector<16x32xf32>
    %cst_20 = arith.constant 1.000000e+00 : f32
    %49 = vector.broadcast %cst_20 : f32 to vector<16x32xf32>
    %50 = arith.addf %49, %48 : vector<16x32xf32>
    %cst_21 = arith.constant 0.000000e+00 : f32
    %51 = vector.broadcast %cst_21 : f32 to vector<16x32xf32>
    %52 = arith.maximumf %50, %51 : vector<16x32xf32>
    %cst_22 = arith.constant -2.500000e+00 : f32
    %53 = vector.broadcast %cst_22 : f32 to vector<16x32xf32>
    %54 = math.powf %52, %53 : vector<16x32xf32>
    %cst_23 = arith.constant dense<0.000000e+00> : vector<16xf32>
    %55 = vector.multi_reduction <add>, %54, %cst_23 [1] : vector<16x32xf32> to vector<16xf32>
    %56 = vector.shape_cast %55 : vector<16xf32> to vector<16x1xf32>
    %cst_24 = arith.constant -4.000000e-01 : f32
    %57 = vector.broadcast %cst_24 : f32 to vector<16x1xf32>
    %58 = math.powf %56, %57 : vector<16x1xf32>
    %59 = vector.broadcast %58 : vector<16x1xf32> to vector<16x32xf32>
    %60 = arith.mulf %4, %59 : vector<16x32xf32>
    %cst_25 = arith.constant -4.000000e-01 : f32
    %61 = vector.broadcast %cst_25 : f32 to vector<16x32xf32>
    %62 = arith.mulf %61, %60 : vector<16x32xf32>
    %cst_26 = arith.constant 1.000000e+00 : f32
    %63 = vector.broadcast %cst_26 : f32 to vector<16x32xf32>
    %64 = arith.addf %63, %62 : vector<16x32xf32>
    %cst_27 = arith.constant 0.000000e+00 : f32
    %65 = vector.broadcast %cst_27 : f32 to vector<16x32xf32>
    %66 = arith.maximumf %64, %65 : vector<16x32xf32>
    %cst_28 = arith.constant -2.500000e+00 : f32
    %67 = vector.broadcast %cst_28 : f32 to vector<16x32xf32>
    %68 = math.powf %66, %67 : vector<16x32xf32>
    %cst_29 = arith.constant dense<0.000000e+00> : vector<16xf32>
    %69 = vector.multi_reduction <add>, %68, %cst_29 [1] : vector<16x32xf32> to vector<16xf32>
    %70 = vector.shape_cast %69 : vector<16xf32> to vector<16x1xf32>
    %cst_30 = arith.constant -4.000000e-01 : f32
    %71 = vector.broadcast %cst_30 : f32 to vector<16x1xf32>
    %72 = math.powf %70, %71 : vector<16x1xf32>
    %73 = vector.broadcast %72 : vector<16x1xf32> to vector<16x32xf32>
    %74 = arith.mulf %4, %73 : vector<16x32xf32>
    %cst_31 = arith.constant -4.000000e-01 : f32
    %75 = vector.broadcast %cst_31 : f32 to vector<16x32xf32>
    %76 = arith.mulf %75, %74 : vector<16x32xf32>
    %cst_32 = arith.constant 1.000000e+00 : f32
    %77 = vector.broadcast %cst_32 : f32 to vector<16x32xf32>
    %78 = arith.addf %77, %76 : vector<16x32xf32>
    %cst_33 = arith.constant 0.000000e+00 : f32
    %79 = vector.broadcast %cst_33 : f32 to vector<16x32xf32>
    %80 = arith.maximumf %78, %79 : vector<16x32xf32>
    %cst_34 = arith.constant -2.500000e+00 : f32
    %81 = vector.broadcast %cst_34 : f32 to vector<16x32xf32>
    %82 = math.powf %80, %81 : vector<16x32xf32>
    %cst_35 = arith.constant dense<0.000000e+00> : vector<16xf32>
    %83 = vector.multi_reduction <add>, %82, %cst_35 [1] : vector<16x32xf32> to vector<16xf32>
    %84 = vector.shape_cast %83 : vector<16xf32> to vector<16x1xf32>
    %cst_36 = arith.constant 1.000000e+00 : f32
    %85 = vector.broadcast %cst_36 : f32 to vector<16x1xf32>
    %86 = arith.divf %85, %84 : vector<16x1xf32>
    %cst_37 = arith.constant -4.000000e-01 : f32
    %87 = vector.broadcast %cst_37 : f32 to vector<16x1xf32>
    %88 = math.powf %86, %87 : vector<16x1xf32>
    %cst_38 = arith.constant 1.000000e+00 : f32
    %89 = vector.broadcast %cst_38 : f32 to vector<16x1xf32>
    %90 = arith.subf %88, %89 : vector<16x1xf32>
    %cst_39 = arith.constant -4.000000e-01 : f32
    %91 = vector.broadcast %cst_39 : f32 to vector<16x1xf32>
    %92 = arith.divf %90, %91 : vector<16x1xf32>
    %cst_40 = arith.constant 0.000000e+00 : f32
    %93 = vector.broadcast %cst_40 : f32 to vector<16x1xf32>
    %94 = arith.subf %93, %92 : vector<16x1xf32>
    %95 = arith.addf %94, %2 : vector<16x1xf32>
    %96 = vector.broadcast %95 : vector<16x1xf32> to vector<16x32xf32>
    %97 = arith.subf %0, %96 : vector<16x32xf32>
    %cst_41 = arith.constant -4.000000e-01 : f32
    %98 = vector.broadcast %cst_41 : f32 to vector<16x32xf32>
    %99 = arith.mulf %98, %97 : vector<16x32xf32>
    %cst_42 = arith.constant 1.000000e+00 : f32
    %100 = vector.broadcast %cst_42 : f32 to vector<16x32xf32>
    %101 = arith.addf %100, %99 : vector<16x32xf32>
    %cst_43 = arith.constant 0.000000e+00 : f32
    %102 = vector.broadcast %cst_43 : f32 to vector<16x32xf32>
    %103 = arith.maximumf %101, %102 : vector<16x32xf32>
    %cst_44 = arith.constant -2.500000e+00 : f32
    %104 = vector.broadcast %cst_44 : f32 to vector<16x32xf32>
    %105 = math.powf %103, %104 : vector<16x32xf32>
    %cst_45 = arith.constant 2.000000e-01 : f32
    %106 = vector.broadcast %cst_45 : f32 to vector<16x32xf32>
    %107 = math.powf %105, %106 : vector<16x32xf32>
    %cst_46 = arith.constant 1.000000e+00 : f32
    %108 = vector.broadcast %cst_46 : f32 to vector<16x32xf32>
    %109 = arith.subf %107, %108 : vector<16x32xf32>
    %cst_47 = arith.constant 2.000000e-01 : f32
    %110 = vector.broadcast %cst_47 : f32 to vector<16x32xf32>
    %111 = arith.divf %109, %110 : vector<16x32xf32>
    %112 = arith.mulf %107, %105 : vector<16x32xf32>
    %c0_48 = arith.constant 0 : index
    %c0_49 = arith.constant 0 : index
    %113 = vector.load %arg1[%c0_48, %c0_49] : memref<16x1xi32, #tpu.memory_space<vmem>>, vector<16x1xi32>
    %114 = tpu.iota {dimensions = array<i32: 1>} : vector<16x32xi32>
    %115 = vector.broadcast %113 : vector<16x1xi32> to vector<16x32xi32>
    %116 = arith.cmpi eq, %114, %115 : vector<16x32xi32>
    %117 = arith.extui %116 : vector<16x32xi1> to vector<16x32xi32>
    %118 = arith.sitofp %117 : vector<16x32xi32> to vector<16x32xf32>
    %cst_50 = arith.constant 0.896774172 : f32
    %119 = vector.broadcast %cst_50 : f32 to vector<16x32xf32>
    %120 = arith.mulf %118, %119 : vector<16x32xf32>
    %cst_51 = arith.constant 0.0032258064 : f32
    %121 = vector.broadcast %cst_51 : f32 to vector<16x32xf32>
    %122 = arith.addf %120, %121 : vector<16x32xf32>
    %cst_52 = arith.constant 1.200000e+00 : f32
    %123 = vector.broadcast %cst_52 : f32 to vector<16x32xf32>
    %124 = arith.divf %112, %123 : vector<16x32xf32>
    %125 = arith.mulf %122, %111 : vector<16x32xf32>
    %126 = arith.subf %124, %125 : vector<16x32xf32>
    %cst_53 = arith.constant dense<0.000000e+00> : vector<16xf32>
    %127 = vector.multi_reduction <add>, %126, %cst_53 [1] : vector<16x32xf32> to vector<16xf32>
    %128 = vector.shape_cast %127 : vector<16xf32> to vector<16x1xf32>
    %cst_54 = arith.constant -1.19590688 : f32
    %129 = vector.broadcast %cst_54 : f32 to vector<16x1xf32>
    %130 = arith.addf %128, %129 : vector<16x1xf32>
    %c0_55 = arith.constant 0 : index
    %c0_56 = arith.constant 0 : index
    %131 = vector.load %arg3[%c0_55, %c0_56] : memref<16x1xf32, #tpu.memory_space<vmem>>, vector<16x1xf32>
    tpu.vector_store %arg3[%c0_55, %c0_56], %130 {strides = array<i32>} : memref<16x1xf32, #tpu.memory_space<vmem>>, vector<16x1xf32>,
    return
  }
  func.func @transform_0(%arg0: i32) -> (i32, i32) {
    %c0_i32 = arith.constant 0 : i32
    %c0_i32_0 = arith.constant 0 : i32
    return %arg0, %c0_i32 : i32, i32
  }
  func.func @transform_1(%arg0: i32) -> (i32, i32) {
    %c0_i32 = arith.constant 0 : i32
    %c0_i32_0 = arith.constant 0 : i32
    return %arg0, %c0_i32 : i32, i32
  }
  func.func @transform_2(%arg0: i32) -> (i32, i32) {
    %c0_i32 = arith.constant 0 : i32
    %c0_i32_0 = arith.constant 0 : i32
    return %arg0, %c0_i32 : i32, i32
  }
}

</mosaic_0001>

<llo_original>
// kernel: tpu_custom_call.1
$region0: #{tpu_custom_call.1}
  #allocation0 [shape = 'u32[]', space=smem, size = 0x4, offset = 0x4, fixed_abs, tag = 'smem constant byte address 0x4 - core index']
  #allocation1 [shape = 'u32[144,128]{1,0:T(1,128)}', space=vmem, size = 0x12000, scoped, tag = 'internal scratch']
  %s0 = inlined_call_operand.vmem [shape: s32[16,1], index: 0, kind: input, shape index: {}]
  %s1 = inlined_call_operand.vmem [shape: f32[16,32], index: 1, kind: input, shape index: {}]
  %s2 = inlined_call_operand.vmem [shape: f32[16,1], index: 2, kind: output, shape index: {}]
  %s3 = sld [smem:[#allocation0]]
  $region18: #{tpu_custom_call.1} parent=0
    _
  %s5 = ssub.s32 1, %s3
  %s6 = scalar_select 0, %s5, %s3
  // Predicated region
  $region2: #{tpu_custom_call.1} parent=0 // pred_check
    _
  $region3: #{tpu_custom_call.1} parent=0 // pred_check_branch
    %8 = sbr.rel (0) target = $region5
  $region4: #{tpu_custom_call.1} parent=0 // pred_region
    _
  $region5: #{tpu_custom_call.1} parent=0 // pred_fallthru
    _
  // Predicated region
  $region6: #{tpu_custom_call.1} parent=0 // pred_check
    _
  $region7: #{tpu_custom_call.1} parent=0 // pred_check_branch
    %10 = sbr.rel (0) target = $region9
  $region8: #{tpu_custom_call.1} parent=0 // pred_region
    _
  $region9: #{tpu_custom_call.1} parent=0 // pred_fallthru
    _
  %v11 = vld [vmem:[%s1] sm:$0xff]
  %v12 = vld [vmem:[%s1 + $0x8] sm:$0xff]
  %vm13 = vcmask 261120
  %v14 = vsel %vm13, %v11, -inf
  %15 = vmax.xlane.f32.xlu0 %v14
  %v16 = vpop.xlane.xlu0 %15
  %v17 = vsel %vm13, %v12, -inf
  %18 = vmax.xlane.f32.xlu0 %v17
  %v19 = vpop.xlane.xlu0 %18
  %v20 = vsub.f32 %v11, %v16
  %v21 = vsub.f32 %v12, %v19
  %v22 = vmul.f32 %v20, -0.4
  %v23 = vmul.f32 %v21, -0.4
  %v24 = vadd.f32 %v22, 1.0
  %v25 = vadd.f32 %v23, 1.0
  %v26 = vmax.f32 %v24, 0.0
  %v27 = vmax.f32 %v25, 0.0
  %v28 = vpow.f32 %v26, -2.5
  %v29 = vpow.f32 %v27, -2.5
  %v30 = vsel %vm13, %v28, 0.0
  %31 = vadd.xlane.f32.xlu0 %v30
  %v32 = vpop.xlane.xlu0 %31
  %v33 = vsel %vm13, %v29, 0.0
  %34 = vadd.xlane.f32.xlu0 %v33
  %v35 = vpop.xlane.xlu0 %34
  %v36 = vpow.f32 %v32, -0.4
  %v37 = vpow.f32 %v35, -0.4
  %v38 = vmul.f32 %v20, %v36
  %v39 = vmul.f32 %v21, %v37
  %v40 = vmul.f32 %v38, -0.4
  %v41 = vmul.f32 %v39, -0.4
  %v42 = vadd.f32 %v40, 1.0
  %v43 = vadd.f32 %v41, 1.0
  %v44 = vmax.f32 %v42, 0.0
  %v45 = vmax.f32 %v43, 0.0
  %v46 = vpow.f32 %v44, -2.5
  %v47 = vpow.f32 %v45, -2.5
  %v48 = vsel %vm13, %v46, 0.0
  %49 = vadd.xlane.f32.xlu0 %v48
  %v50 = vpop.xlane.xlu0 %49
  %v51 = vsel %vm13, %v47, 0.0
  %52 = vadd.xlane.f32.xlu0 %v51
  %v53 = vpop.xlane.xlu0 %52
  %v54 = vpow.f32 %v50, -0.4
  %v55 = vpow.f32 %v53, -0.4
  %v56 = vmul.f32 %v20, %v54
  %v57 = vmul.f32 %v21, %v55
  %v58 = vmul.f32 %v56, -0.4
  %v59 = vmul.f32 %v57, -0.4
  %v60 = vadd.f32 %v58, 1.0
  %v61 = vadd.f32 %v59, 1.0
  %v62 = vmax.f32 %v60, 0.0
  %v63 = vmax.f32 %v61, 0.0
  %v64 = vpow.f32 %v62, -2.5
  %v65 = vpow.f32 %v63, -2.5
  %v66 = vsel %vm13, %v64, 0.0
  %67 = vadd.xlane.f32.xlu0 %v66
  %v68 = vpop.xlane.xlu0 %67
  %v69 = vsel %vm13, %v65, 0.0
  %70 = vadd.xlane.f32.xlu0 %v69
  %v71 = vpop.xlane.xlu0 %70
  %v72 = vpow.f32 %v68, -0.4
  %v73 = vpow.f32 %v71, -0.4
  %v74 = vmul.f32 %v20, %v72
  %v75 = vmul.f32 %v21, %v73
  %v76 = vmul.f32 %v74, -0.4
  %v77 = vmul.f32 %v75, -0.4
  %v78 = vadd.f32 %v76, 1.0
  %v79 = vadd.f32 %v77, 1.0
  %v80 = vmax.f32 %v78, 0.0
  %v81 = vmax.f32 %v79, 0.0
  %v82 = vpow.f32 %v80, -2.5
  %v83 = vpow.f32 %v81, -2.5
  %v84 = vsel %vm13, %v82, 0.0
  %85 = vadd.xlane.f32.xlu0 %v84
  %v86 = vpop.xlane.xlu0 %85
  %v87 = vsel %vm13, %v83, 0.0
  %88 = vadd.xlane.f32.xlu0 %v87
  %v89 = vpop.xlane.xlu0 %88
  %v90 = vpow.f32 %v86, -0.4
  %v91 = vpow.f32 %v89, -0.4
  %v92 = vmul.f32 %v20, %v90
  %v93 = vmul.f32 %v21, %v91
  %v94 = vmul.f32 %v92, -0.4
  %v95 = vmul.f32 %v93, -0.4
  %v96 = vadd.f32 %v94, 1.0
  %v97 = vadd.f32 %v95, 1.0
  %v98 = vmax.f32 %v96, 0.0
  %v99 = vmax.f32 %v97, 0.0
  %v100 = vpow.f32 %v98, -2.5
  %v101 = vpow.f32 %v99, -2.5
  %v102 = vsel %vm13, %v100, 0.0
  %103 = vadd.xlane.f32.xlu0 %v102
  %v104 = vpop.xlane.xlu0 %103
  %v105 = vsel %vm13, %v101, 0.0
  %106 = vadd.xlane.f32.xlu0 %v105
  %v107 = vpop.xlane.xlu0 %106
  %v108 = vpow.f32 %v104, -0.4
  %v109 = vpow.f32 %v107, -0.4
  %v110 = vmul.f32 %v20, %v108
  %v111 = vmul.f32 %v21, %v109
  %v112 = vmul.f32 %v110, -0.4
  %v113 = vmul.f32 %v111, -0.4
  %v114 = vadd.f32 %v112, 1.0
  %v115 = vadd.f32 %v113, 1.0
  %v116 = vmax.f32 %v114, 0.0
  %v117 = vmax.f32 %v115, 0.0
  %v118 = vpow.f32 %v116, -2.5
  %v119 = vpow.f32 %v117, -2.5
  %v120 = vsel %vm13, %v118, 0.0
  %121 = vadd.xlane.f32.xlu0 %v120
  %v122 = vpop.xlane.xlu0 %121
  %v123 = vsel %vm13, %v119, 0.0
  %124 = vadd.xlane.f32.xlu0 %v123
  %v125 = vpop.xlane.xlu0 %124
  %v126 = vrcp.pop %v122
  %v127 = vmul.f32 1.0, %v126
  %v128 = vrcp.pop %v125
  %v129 = vmul.f32 1.0, %v128
  %v130 = vpow.f32 %v127, -0.4
  %v131 = vpow.f32 %v129, -0.4
  %v132 = vsub.f32 %v130, 1.0
  %v133 = vsub.f32 %v131, 1.0
  %v134 = vrcp.pop -0.4
  %v135 = vmul.f32 %v132, %v134
  %v136 = vmul.f32 %v133, %v134
  %v137 = vsub.f32 0.0, %v135
  %v138 = vsub.f32 0.0, %v136
  %v139 = vadd.f32 %v137, %v16
  %v140 = vadd.f32 %v138, %v19
  %v141 = vsub.f32 %v11, %v139
  %v142 = vsub.f32 %v12, %v140
  %v143 = vmul.f32 %v141, -0.4
  %v144 = vmul.f32 %v142, -0.4
  %v145 = vadd.f32 %v143, 1.0
  %v146 = vadd.f32 %v144, 1.0
  %v147 = vmax.f32 %v145, 0.0
  %v148 = vmax.f32 %v146, 0.0
  %v149 = vpow.f32 %v147, -2.5
  %v150 = vpow.f32 %v148, -2.5
  %v151 = vpow.f32 %v149, 0.2
  %v152 = vpow.f32 %v150, 0.2
  %v153 = vsub.f32 %v151, 1.0
  %v154 = vsub.f32 %v152, 1.0
  %v155 = vrcp.pop 0.2
  %v156 = vmul.f32 %v153, %v155
  %v157 = vmul.f32 %v154, %v155
  %v158 = vmul.f32 %v151, %v149
  %v159 = vmul.f32 %v152, %v150
  %v160 = vld [vmem:[%s0] sm:$0xff]
  %v161 = vld [vmem:[%s0 + $0x8] sm:$0xff]
  %v162 = vlaneseq
  %v163 = vand.u32 %v162, 127
  %164 = vset.pattern.permute.xlu0 0
  %165 = vperm.xlu0 %164, %v160
  %v166 = vpop.permute.xlu0 %165
  %167 = vset.pattern.permute.xlu0 0
  %168 = vperm.xlu0 %167, %v161
  %v169 = vpop.permute.xlu0 %168
  %vm170 = vcmp.eq.s32.totalorder %v163, %v166
  %vm171 = vcmp.eq.s32.totalorder %v163, %v169
  %v172 = vsel %vm170, 1, 0
  %v173 = vsel %vm171, 1, 0
  %v174 = vcvt.s32.f32 %v172
  %v175 = vcvt.s32.f32 %v173
  %v176 = vmul.f32 %v174, 0.8967742
  %v177 = vmul.f32 %v175, 0.8967742
  %v178 = vadd.f32 %v176, 0.0032258064
  %v179 = vadd.f32 %v177, 0.0032258064
  %v180 = vrcp.pop 1.2
  %v181 = vmul.f32 %v158, %v180
  %v182 = vmul.f32 %v159, %v180
  %v183 = vmul.f32 %v178, %v156
  %v184 = vmul.f32 %v179, %v157
  %v185 = vsub.f32 %v181, %v183
  %v186 = vsub.f32 %v182, %v184
  %v187 = vsel %vm13, %v185, 0.0
  %188 = vadd.xlane.f32.xlu0 %v187
  %v189 = vpop.xlane.xlu0 %188
  %v190 = vsel %vm13, %v186, 0.0
  %191 = vadd.xlane.f32.xlu0 %v190
  %v192 = vpop.xlane.xlu0 %191
  %v193 = vadd.f32 %v189, -1.1959069
  %v194 = vadd.f32 %v192, -1.1959069
  %vm195 = vcmask 7168
  %196 = vst.msk [vmem:[%s2] sm:$0xff] %vm195, %v193
  %197 = vst.msk [vmem:[%s2 + $0x8] sm:$0xff] %vm195, %v194
  // Predicated region
  $region10: #{tpu_custom_call.1} parent=0 // pred_check
    _
  $region11: #{tpu_custom_call.1} parent=0 // pred_check_branch
    %199 = sbr.rel (0) target = $region13
  $region12: #{tpu_custom_call.1} parent=0 // pred_region
    _
  $region13: #{tpu_custom_call.1} parent=0 // pred_fallthru
    _
  // Predicated region
  $region14: #{tpu_custom_call.1} parent=0 // pred_check
    _
  $region15: #{tpu_custom_call.1} parent=0 // pred_check_branch
    %201 = sbr.rel (0) target = $region17
  $region16: #{tpu_custom_call.1} parent=0 // pred_region
    _
  $region17: #{tpu_custom_call.1} parent=0 // pred_fallthru
    _

</llo_original>
